<compile_context>
chip_gen: v5e
topology: v5e:2x2
jax: 0.10.0
libtpu: 0.0.40
codegen_flags: <defaults>
</compile_context>

<pallas_src>
import functools

import jax
import jax.numpy as jnp
from jax.experimental import pallas as pl
from jax.experimental.pallas import tpu as pltpu

LANES = 128  # TPU lane width; head output is padded to this for dense stores


def _round_up(n, m):
    return ((n + m - 1) // m) * m


def _credit_kernel(action_dim,
                   x_ref, r_ref, w1x_ref, w1r_ref, b1_ref,
                   w2_ref, b2_ref, wh_ref, bh_ref, out_ref):
    # layer 1: relu(x @ W1x + r * W1r + b1)   (split-W1 replaces cat([x, r], 1))
    h = jnp.dot(x_ref[...], w1x_ref[...], preferred_element_type=jnp.float32)
    h = jnp.maximum(h + r_ref[...] * w1r_ref[...] + b1_ref[...], 0.0)

    # layer 2: relu(h @ W2 + b2)
    h = jnp.dot(h, w2_ref[...], preferred_element_type=jnp.float32)
    h = jnp.maximum(h + b2_ref[...], 0.0)

    # fused heads: one MXU push, lane-dense [TB, 128] result.
    # columns [0, A)  -> mu    (tanh)
    # columns [A, 2A) -> sigma (softplus, PyTorch beta=1 / threshold=20)
    z = jnp.dot(h, wh_ref[...], preferred_element_type=jnp.float32) + bh_ref[...]
    mu = jnp.tanh(z)
    sigma = jnp.where(z > 20.0, z, jnp.log1p(jnp.exp(jnp.minimum(z, 20.0))))
    col = jax.lax.broadcasted_iota(jnp.int32, z.shape, dimension=1)
    out_ref[...] = jnp.where(col < action_dim, mu, sigma)


@functools.partial(jax.jit, static_argnames=("action_dim",))
def credit_forward(x, r, kparams, *, action_dim):
    """x: [B, state_dim] f32, r: [B] f32 -> (mu [B, A], sigma [B, A])."""
    B, state_dim = x.shape
    hidden = kparams["w2"].shape[0]
    head_pad = kparams["wh"].shape[1]

    r2 = r.reshape(B, 1)

    # Split a large batch into 128-row tiles across a "parallel" grid axis
    # (v7x: the two TensorCores each take half); small batches run gridless.
    TB = 128 if (B > 128 and B % 128 == 0) else B
    grid = (B // TB,)

    row_map = lambda i: (i, 0)   # batch-tiled operands
    rep_map = lambda i: (0, 0)   # weights/biases: same block every step

    in_specs = [
        pl.BlockSpec((TB, state_dim), row_map),     # x
        pl.BlockSpec((TB, 1), row_map),             # r
        pl.BlockSpec((state_dim, hidden), rep_map),  # w1x
        pl.BlockSpec((1, hidden), rep_map),          # w1r
        pl.BlockSpec((1, hidden), rep_map),          # b1
        pl.BlockSpec((hidden, hidden), rep_map),     # w2
        pl.BlockSpec((1, hidden), rep_map),          # b2
        pl.BlockSpec((hidden, head_pad), rep_map),   # fused head weight
        pl.BlockSpec((1, head_pad), rep_map),        # fused head bias
    ]
    out_spec = pl.BlockSpec((TB, head_pad), row_map)

    out = pl.pallas_call(
        functools.partial(_credit_kernel, action_dim),
        out_shape=jax.ShapeDtypeStruct((B, head_pad), jnp.float32),
        grid=grid,
        in_specs=in_specs,
        out_specs=out_spec,
        compiler_params=pltpu.CompilerParams(
            dimension_semantics=("parallel",)),
    )(x, r2, kparams["w1x"], kparams["w1r"], kparams["b1"],
      kparams["w2"], kparams["b2"], kparams["wh"], kparams["bh"])

    mu = out[:, :action_dim]
    sigma = out[:, action_dim:2 * action_dim]
    return mu, sigma


def pack_params(params, state_dim, action_dim):
    """One-time repack of PyTorch-style params into kernel-ready layout:
       - W1 split into x-rows and r-row (removes per-call host concat)
       - mu/sigma head weights fused + zero-padded to a 128-lane slab."""
    w1 = params["w1"]                      # [state_dim + 1, hidden]
    hidden = w1.shape[1]
    head_pad = max(LANES, _round_up(2 * action_dim, LANES))

    wh = jnp.zeros((hidden, head_pad), jnp.float32)
    wh = wh.at[:, :action_dim].set(params["wmu"])
    wh = wh.at[:, action_dim:2 * action_dim].set(params["wsg"])
    bh = jnp.zeros((1, head_pad), jnp.float32)
    bh = bh.at[:, :action_dim].set(params["bmu"])
    bh = bh.at[:, action_dim:2 * action_dim].set(params["bsg"])

    return dict(
        w1x=w1[:state_dim],
        w1r=w1[state_dim:state_dim + 1],
        b1=params["b1"],
        w2=params["w2"],
        b2=params["b2"],
        wh=wh,
        bh=bh,
    )


def init_params(key, state_dim, action_dim, hidden=128):
    """Deterministic init mimicking PyTorch Linear default U(-1/sqrt(fan_in), 1/sqrt(fan_in))."""
    def linear(k, fan_in, fan_out):
        kw, kb = jax.random.split(k)
        bound = 1.0 / jnp.sqrt(jnp.float32(fan_in))
        w = jax.random.uniform(kw, (fan_in, fan_out), jnp.float32, -bound, bound)
        b = jax.random.uniform(kb, (1, fan_out), jnp.float32, -bound, bound)
        return w, b

    k1, k2, k3, k4 = jax.random.split(key, 4)
    w1, b1 = linear(k1, state_dim + 1, hidden)
    w2, b2 = linear(k2, hidden, hidden)
    wmu, bmu = linear(k3, hidden, action_dim)
    wsg, bsg = linear(k4, hidden, action_dim)
    return dict(w1=w1, b1=b1, w2=w2, b2=b2,
                wmu=wmu, bmu=bmu, wsg=wsg, bsg=bsg)


if __name__ == "__main__":
    state_dim = 16
    action_dim = 4
    batch = 8  # NOTE: for real workloads batch >=128 envs/steps per call to fill the MXU

    key = jax.random.PRNGKey(0)
    kp, kx, kr = jax.random.split(key, 3)

    params = init_params(kp, state_dim, action_dim)
    kparams = pack_params(params, state_dim, action_dim)
    x = jax.random.normal(kx, (batch, state_dim), jnp.float32)
    r = jax.random.normal(kr, (batch,), jnp.float32)

    mu, sigma = credit_forward(x, r, kparams, action_dim=action_dim)
    jax.block_until_ready((mu, sigma))

    # sanity checks against a pure-JAX reference of the original module
    xr = jnp.concatenate([x, r[:, None]], axis=1)
    h = jnp.maximum(xr @ params["w1"] + params["b1"], 0.0)
    h = jnp.maximum(h @ params["w2"] + params["b2"], 0.0)
    mu_ref = jnp.tanh(h @ params["wmu"] + params["bmu"])
    sigma_ref = jax.nn.softplus(h @ params["wsg"] + params["bsg"])
    assert mu.shape == (batch, action_dim) and sigma.shape == (batch, action_dim)
    assert jnp.allclose(mu, mu_ref, atol=1e-5), "mu mismatch"
    assert jnp.allclose(sigma, sigma_ref, atol=1e-5), "sigma mismatch"
    assert bool(jnp.all(sigma > 0.0)), "softplus output must be positive"

    print("KERNEL_OK")
</pallas_src>

<mosaic_0001>
module attributes {stable_mosaic.version = 11 : i64} {
  func.func @_credit_kernel(%arg0: i32, %arg1: memref<8x16xf32, #tpu.memory_space<vmem>>, %arg2: memref<8x1xf32, #tpu.memory_space<vmem>>, %arg3: memref<16x128xf32, #tpu.memory_space<vmem>>, %arg4: memref<1x128xf32, #tpu.memory_space<vmem>>, %arg5: memref<1x128xf32, #tpu.memory_space<vmem>>, %arg6: memref<128x128xf32, #tpu.memory_space<vmem>>, %arg7: memref<1x128xf32, #tpu.memory_space<vmem>>, %arg8: memref<128x128xf32, #tpu.memory_space<vmem>>, %arg9: memref<1x128xf32, #tpu.memory_space<vmem>>, %arg10: memref<8x128xf32, #tpu.memory_space<vmem>>) attributes {dimension_semantics = [#tpu.dimension_semantics<parallel>], iteration_bounds = array<i64: 1>, scalar_prefetch = 0 : i64, scratch_operands = 0 : i64, tpu.core_type = #tpu.core_type<tc>, window_params = [{transform_indices = @transform_0, window_bounds = array<i64: 8, 16>}, {transform_indices = @transform_1, window_bounds = array<i64: 8, 1>}, {pipeline_mode = #tpu.pipeline_mode<synchronous>, transform_indices = @transform_2, window_bounds = array<i64: 16, 128>}, {pipeline_mode = #tpu.pipeline_mode<synchronous>, transform_indices = @transform_3, window_bounds = array<i64: 1, 128>}, {pipeline_mode = #tpu.pipeline_mode<synchronous>, transform_indices = @transform_4, window_bounds = array<i64: 1, 128>}, {pipeline_mode = #tpu.pipeline_mode<synchronous>, transform_indices = @transform_5, window_bounds = array<i64: 128, 128>}, {pipeline_mode = #tpu.pipeline_mode<synchronous>, transform_indices = @transform_6, window_bounds = array<i64: 1, 128>}, {pipeline_mode = #tpu.pipeline_mode<synchronous>, transform_indices = @transform_7, window_bounds = array<i64: 128, 128>}, {pipeline_mode = #tpu.pipeline_mode<synchronous>, transform_indices = @transform_8, window_bounds = array<i64: 1, 128>}, {transform_indices = @transform_9, window_bounds = array<i64: 8, 128>}]} {
    %c0 = arith.constant 0 : index
    %c0_0 = arith.constant 0 : index
    %0 = vector.load %arg1[%c0, %c0_0] : memref<8x16xf32, #tpu.memory_space<vmem>>, vector<8x16xf32>
    %c0_1 = arith.constant 0 : index
    %c0_2 = arith.constant 0 : index
    %1 = vector.load %arg3[%c0_1, %c0_2] : memref<16x128xf32, #tpu.memory_space<vmem>>, vector<16x128xf32>
    %cst = arith.constant dense<0.000000e+00> : vector<8x128xf32>
    %2 = tpu.matmul %0, %1, %cst {dimension_numbers = #tpu.dot_dimension_numbers<[1], [0], [0], [1], [0, 0, 1, 1], [], []>} : vector<8x16xf32>, vector<16x128xf32>, vector<8x128xf32> -> vector<8x128xf32>
    %c0_3 = arith.constant 0 : index
    %c0_4 = arith.constant 0 : index
    %3 = vector.load %arg2[%c0_3, %c0_4] : memref<8x1xf32, #tpu.memory_space<vmem>>, vector<8x1xf32>
    %c0_5 = arith.constant 0 : index
    %c0_6 = arith.constant 0 : index
    %4 = vector.load %arg4[%c0_5, %c0_6] : memref<1x128xf32, #tpu.memory_space<vmem>>, vector<1x128xf32>
    %5 = vector.broadcast %3 : vector<8x1xf32> to vector<8x128xf32>
    %6 = vector.broadcast %4 : vector<1x128xf32> to vector<8x128xf32>
    %7 = arith.mulf %5, %6 : vector<8x128xf32>
    %8 = arith.addf %2, %7 : vector<8x128xf32>
    %c0_7 = arith.constant 0 : index
    %c0_8 = arith.constant 0 : index
    %9 = vector.load %arg5[%c0_7, %c0_8] : memref<1x128xf32, #tpu.memory_space<vmem>>, vector<1x128xf32>
    %10 = vector.broadcast %9 : vector<1x128xf32> to vector<8x128xf32>
    %11 = arith.addf %8, %10 : vector<8x128xf32>
    %cst_9 = arith.constant 0.000000e+00 : f32
    %12 = vector.broadcast %cst_9 : f32 to vector<8x128xf32>
    %13 = arith.maximumf %11, %12 : vector<8x128xf32>
    %c0_10 = arith.constant 0 : index
    %c0_11 = arith.constant 0 : index
    %14 = vector.load %arg6[%c0_10, %c0_11] : memref<128x128xf32, #tpu.memory_space<vmem>>, vector<128x128xf32>
    %cst_12 = arith.constant dense<0.000000e+00> : vector<8x128xf32>
    %15 = tpu.matmul %13, %14, %cst_12 {dimension_numbers = #tpu.dot_dimension_numbers<[1], [0], [0], [1], [0, 0, 1, 1], [], []>} : vector<8x128xf32>, vector<128x128xf32>, vector<8x128xf32> -> vector<8x128xf32>
    %c0_13 = arith.constant 0 : index
    %c0_14 = arith.constant 0 : index
    %16 = vector.load %arg7[%c0_13, %c0_14] : memref<1x128xf32, #tpu.memory_space<vmem>>, vector<1x128xf32>
    %17 = vector.broadcast %16 : vector<1x128xf32> to vector<8x128xf32>
    %18 = arith.addf %15, %17 : vector<8x128xf32>
    %cst_15 = arith.constant 0.000000e+00 : f32
    %19 = vector.broadcast %cst_15 : f32 to vector<8x128xf32>
    %20 = arith.maximumf %18, %19 : vector<8x128xf32>
    %c0_16 = arith.constant 0 : index
    %c0_17 = arith.constant 0 : index
    %21 = vector.load %arg8[%c0_16, %c0_17] : memref<128x128xf32, #tpu.memory_space<vmem>>, vector<128x128xf32>
    %cst_18 = arith.constant dense<0.000000e+00> : vector<8x128xf32>
    %22 = tpu.matmul %20, %21, %cst_18 {dimension_numbers = #tpu.dot_dimension_numbers<[1], [0], [0], [1], [0, 0, 1, 1], [], []>} : vector<8x128xf32>, vector<128x128xf32>, vector<8x128xf32> -> vector<8x128xf32>
    %c0_19 = arith.constant 0 : index
    %c0_20 = arith.constant 0 : index
    %23 = vector.load %arg9[%c0_19, %c0_20] : memref<1x128xf32, #tpu.memory_space<vmem>>, vector<1x128xf32>
    %24 = vector.broadcast %23 : vector<1x128xf32> to vector<8x128xf32>
    %25 = arith.addf %22, %24 : vector<8x128xf32>
    %26 = math.tanh %25 : vector<8x128xf32>
    %cst_21 = arith.constant 2.000000e+01 : f32
    %27 = vector.broadcast %cst_21 : f32 to vector<8x128xf32>
    %28 = arith.cmpf ogt, %25, %27 : vector<8x128xf32>
    %cst_22 = arith.constant 2.000000e+01 : f32
    %29 = vector.broadcast %cst_22 : f32 to vector<8x128xf32>
    %30 = arith.minimumf %25, %29 : vector<8x128xf32>
    %31 = math.exp %30 : vector<8x128xf32>
    %32 = math.log1p %31 : vector<8x128xf32>
    %33 = arith.select %28, %25, %32 : vector<8x128xi1>, vector<8x128xf32>
    %34 = tpu.iota {dimensions = array<i32: 1>} : vector<8x128xi32>
    %c4_i32 = arith.constant 4 : i32
    %35 = vector.broadcast %c4_i32 : i32 to vector<8x128xi32>
    %36 = arith.cmpi slt, %34, %35 : vector<8x128xi32>
    %37 = arith.select %36, %26, %33 : vector<8x128xi1>, vector<8x128xf32>
    %c0_23 = arith.constant 0 : index
    %c0_24 = arith.constant 0 : index
    %38 = vector.load %arg10[%c0_23, %c0_24] : memref<8x128xf32, #tpu.memory_space<vmem>>, vector<8x128xf32>
    tpu.vector_store %arg10[%c0_23, %c0_24], %37 {strides = array<i32>} : memref<8x128xf32, #tpu.memory_space<vmem>>, vector<8x128xf32>,
    return
  }
  func.func @transform_0(%arg0: i32) -> (i32, i32) {
    %c0_i32 = arith.constant 0 : i32
    %c0_i32_0 = arith.constant 0 : i32
    return %arg0, %c0_i32 : i32, i32
  }
  func.func @transform_1(%arg0: i32) -> (i32, i32) {
    %c0_i32 = arith.constant 0 : i32
    %c0_i32_0 = arith.constant 0 : i32
    return %arg0, %c0_i32 : i32, i32
  }
  func.func @transform_2(%arg0: i32) -> (i32, i32) {
    %c0_i32 = arith.constant 0 : i32
    %c0_i32_0 = arith.constant 0 : i32
    %c0_i32_1 = arith.constant 0 : i32
    return %c0_i32, %c0_i32_0 : i32, i32
  }
  func.func @transform_3(%arg0: i32) -> (i32, i32) {
    %c0_i32 = arith.constant 0 : i32
    %c0_i32_0 = arith.constant 0 : i32
    %c0_i32_1 = arith.constant 0 : i32
    return %c0_i32, %c0_i32_0 : i32, i32
  }
  func.func @transform_4(%arg0: i32) -> (i32, i32) {
    %c0_i32 = arith.constant 0 : i32
    %c0_i32_0 = arith.constant 0 : i32
    %c0_i32_1 = arith.constant 0 : i32
    return %c0_i32, %c0_i32_0 : i32, i32
  }
  func.func @transform_5(%arg0: i32) -> (i32, i32) {
    %c0_i32 = arith.constant 0 : i32
    %c0_i32_0 = arith.constant 0 : i32
    %c0_i32_1 = arith.constant 0 : i32
    return %c0_i32, %c0_i32_0 : i32, i32
  }
  func.func @transform_6(%arg0: i32) -> (i32, i32) {
    %c0_i32 = arith.constant 0 : i32
    %c0_i32_0 = arith.constant 0 : i32
    %c0_i32_1 = arith.constant 0 : i32
    return %c0_i32, %c0_i32_0 : i32, i32
  }
  func.func @transform_7(%arg0: i32) -> (i32, i32) {
    %c0_i32 = arith.constant 0 : i32
    %c0_i32_0 = arith.constant 0 : i32
    %c0_i32_1 = arith.constant 0 : i32
    return %c0_i32, %c0_i32_0 : i32, i32
  }
  func.func @transform_8(%arg0: i32) -> (i32, i32) {
    %c0_i32 = arith.constant 0 : i32
    %c0_i32_0 = arith.constant 0 : i32
    %c0_i32_1 = arith.constant 0 : i32
    return %c0_i32, %c0_i32_0 : i32, i32
  }
  func.func @transform_9(%arg0: i32) -> (i32, i32) {
    %c0_i32 = arith.constant 0 : i32
    %c0_i32_0 = arith.constant 0 : i32
    return %arg0, %c0_i32 : i32, i32
  }
}

</mosaic_0001>

<llo_original>
// kernel: credit_forward.1
$region0: #{credit_forward.1}
  #allocation0 [shape = 'u32[]', space=smem, size = 0x4, offset = 0x4, fixed_abs, tag = 'smem constant byte address 0x4 - core index']
  #allocation1 [shape = 'u32[72,128]{1,0:T(1,128)}', space=vmem, size = 0x9000, scoped, tag = 'internal scratch']
  %s0 = inlined_call_operand.vmem [shape: f32[8,16], index: 0, kind: input, shape index: {}]
  %s1 = inlined_call_operand.vmem [shape: f32[8,1], index: 1, kind: input, shape index: {}]
  %s2 = inlined_call_operand.hbm [shape: f32[16,128], index: 2, kind: input, shape index: {}]
  %s3 = inlined_call_operand.vmem [shape: f32[1,128], index: 3, kind: input, shape index: {}]
  %s4 = inlined_call_operand.vmem [shape: f32[1,128], index: 4, kind: input, shape index: {}]
  %s5 = inlined_call_operand.hbm [shape: f32[128,128], index: 5, kind: input, shape index: {}]
  %s6 = inlined_call_operand.vmem [shape: f32[1,128], index: 6, kind: input, shape index: {}]
  %s7 = inlined_call_operand.hbm [shape: f32[128,128], index: 7, kind: input, shape index: {}]
  %s8 = inlined_call_operand.vmem [shape: f32[1,128], index: 8, kind: input, shape index: {}]
  %s9 = inlined_call_operand.vmem [shape: f32[8,128], index: 9, kind: output, shape index: {}]
  %s10 = sld [smem:[#allocation0]]
  $region58: #{credit_forward.1} parent=0
    _
  %s12 = ssub.s32 1, %s10
  %s13 = scalar_select 0, %s12, %s10
  $region1: #{credit_forward.1} parent=0
    #allocation2 [shape = 'u8[8192]{0}', space=vmem, size = 0x2000, scoped, tag = 'input window, operand 2, single buffered']
    #allocation3 [shape = 's32[1]{0}', space=sflag, size = 0x4, scoped, tag = 'scoped memory for credit_forward.1']
    #allocation4 [shape = 'u8[65536]{0}', space=vmem, size = 0x10000, scoped, tag = 'input window, operand 5, single buffered']
    #allocation5 [shape = 's32[1]{0}', space=sflag, size = 0x4, scoped, tag = 'scoped memory for credit_forward.1']
    #allocation6 [shape = 'u8[65536]{0}', space=vmem, size = 0x10000, scoped, tag = 'input window, operand 7, single buffered']
    %14 = vsyncpa [#allocation3], 0
    %15 = vsyncpa [#allocation5], 0
    // Predicated region
    $region2: #{credit_forward.1} parent=1 // pred_check
      _
    $region3: #{credit_forward.1} parent=1 // pred_check_branch
      %17 = sbr.rel (0) target = $region5
    $region4: #{credit_forward.1} parent=1 // pred_region
      _
    $region5: #{credit_forward.1} parent=1 // pred_fallthru
      _
    // Predicated region
    $region6: #{credit_forward.1} parent=1 // pred_check
      _
    $region7: #{credit_forward.1} parent=1 // pred_check_branch
      %19 = sbr.rel (0) target = $region9
    $region8: #{credit_forward.1} parent=1 // pred_region
      _
    $region9: #{credit_forward.1} parent=1 // pred_fallthru
      _
    // Predicated region
    $region10: #{credit_forward.1} parent=1 // pred_check
      _
    $region11: #{credit_forward.1} parent=1 // pred_check_branch
      %21 = sbr.rel (0) target = $region13
    $region12: #{credit_forward.1} parent=1 // pred_region
      %23 = vsyncadd [#allocation3], 0
      %s24 = sshll.u32 %s2, 4
      %s25 = int_to_ptr.hbm [resolvable:$true] %s24
      %s26 = sshll.u32 [#allocation2], 4
      %s27 = int_to_ptr.vmem [resolvable:$true] %s26
      %32 = dma.hbm_to_vmem [thread:$0]  %s25, 256, %s27, [#allocation3], 128, 128, 8
    $region13: #{credit_forward.1} parent=1 // pred_fallthru
      _
    // Predicated region
    $region14: #{credit_forward.1} parent=1 // pred_check
      _
    $region15: #{credit_forward.1} parent=1 // pred_check_branch
      %34 = sbr.rel (0) target = $region17
    $region16: #{credit_forward.1} parent=1 // pred_region
      _
    $region17: #{credit_forward.1} parent=1 // pred_fallthru
      _
    // Predicated region
    $region18: #{credit_forward.1} parent=1 // pred_check
      _
    $region19: #{credit_forward.1} parent=1 // pred_check_branch
      %36 = sbr.rel (0) target = $region21
    $region20: #{credit_forward.1} parent=1 // pred_region
      _
    $region21: #{credit_forward.1} parent=1 // pred_fallthru
      _
    // Predicated region
    $region22: #{credit_forward.1} parent=1 // pred_check
      _
    $region23: #{credit_forward.1} parent=1 // pred_check_branch
      %38 = sbr.rel (0) target = $region25
    $region24: #{credit_forward.1} parent=1 // pred_region
      %40 = vsyncadd [#allocation5], 0
      %s41 = sshll.u32 %s5, 4
      %s42 = int_to_ptr.hbm [resolvable:$true] %s41
      %s43 = sshll.u32 [#allocation4], 4
      %s44 = int_to_ptr.vmem [resolvable:$true] %s43
      %49 = dma.hbm_to_vmem [thread:$0]  %s42, 2048, %s44, [#allocation5], 128, 128, 8
    $region25: #{credit_forward.1} parent=1 // pred_fallthru
      _
    // Predicated region
    $region26: #{credit_forward.1} parent=1 // pred_check
      _
    $region27: #{credit_forward.1} parent=1 // pred_check_branch
      %51 = sbr.rel (0) target = $region29
    $region28: #{credit_forward.1} parent=1 // pred_region
      _
    $region29: #{credit_forward.1} parent=1 // pred_fallthru
      _
    // Predicated region
    $region30: #{credit_forward.1} parent=1 // pred_check
      _
    $region31: #{credit_forward.1} parent=1 // pred_check_branch
      %53 = sbr.rel (0) target = $region33
    $region32: #{credit_forward.1} parent=1 // pred_region
      %55 = vsyncadd [#allocation5], 0
      %s56 = sshll.u32 %s7, 4
      %s57 = int_to_ptr.hbm [resolvable:$true] %s56
      %s58 = sshll.u32 [#allocation6], 4
      %s59 = int_to_ptr.vmem [resolvable:$true] %s58
      %64 = dma.hbm_to_vmem [thread:$0]  %s57, 2048, %s59, [#allocation5], 128, 128, 8
    $region33: #{credit_forward.1} parent=1 // pred_fallthru
      _
    // Predicated region
    $region34: #{credit_forward.1} parent=1 // pred_check
      _
    $region35: #{credit_forward.1} parent=1 // pred_check_branch
      %66 = sbr.rel (0) target = $region37
    $region36: #{credit_forward.1} parent=1 // pred_region
      _
    $region37: #{credit_forward.1} parent=1 // pred_fallthru
      _
    // Predicated region
    $region38: #{credit_forward.1} parent=1 // pred_check
      _
    $region39: #{credit_forward.1} parent=1 // pred_check_branch
      %68 = sbr.rel (0) target = $region41
    $region40: #{credit_forward.1} parent=1 // pred_region
      %70 = dma.done [#allocation3], 256
    $region41: #{credit_forward.1} parent=1 // pred_fallthru
      _
    // Predicated region
    $region42: #{credit_forward.1} parent=1 // pred_check
      _
    $region43: #{credit_forward.1} parent=1 // pred_check_branch
      %72 = sbr.rel (0) target = $region45
    $region44: #{credit_forward.1} parent=1 // pred_region
      %74 = dma.done [#allocation5], 2048
    $region45: #{credit_forward.1} parent=1 // pred_fallthru
      _
    // Predicated region
    $region46: #{credit_forward.1} parent=1 // pred_check
      _
    $region47: #{credit_forward.1} parent=1 // pred_check_branch
      %76 = sbr.rel (0) target = $region49
    $region48: #{credit_forward.1} parent=1 // pred_region
      %78 = dma.done [#allocation5], 2048
    $region49: #{credit_forward.1} parent=1 // pred_fallthru
      _
    %v79 = vld [vmem:[%s0] sm:$0xff]
    %v80 = vld [vmem:[#allocation2] sm:$0xff]
    %v81 = vld [vmem:[#allocation2 + $0x8] sm:$0xff]
    %v82 = vld [vmem:[%s1] sm:$0xff]
    %v83 = vld [vmem:[%s3] sm:$0x1]
    %85 = vset.pattern.permute.xlu0 0
    %86 = vperm.xlu0 %85, %v82
    %v87 = vpop.permute.xlu0 %86
    %v90 = vperm.slane %v83, 0
    %v92 = vmul.f32 %v87, %v90
    %vm93 = vcmask 130048
    %v95 = vsel %vm93, %v79, 0
    %97 = vmatpush.msra.mxu0 0.0
    %98 = vmatpush.msra.mxu0 0.0
    %99 = vmatpush.msra.mxu0 0.0
    %100 = vmatpush.msra.mxu0 0.0
    %101 = vmatpush.msra.mxu0 0.0
    %102 = vmatpush.msra.mxu0 0.0
    %103 = vmatpush.msra.mxu0 0.0
    %104 = vmatpush.msra.mxu0 0.0
    %105 = vmatpush.msra.mxu0 0.0
    %106 = vmatpush.msra.mxu0 0.0
    %107 = vmatpush.msra.mxu0 0.0
    %108 = vmatpush.msra.mxu0 0.0
    %109 = vmatpush.msra.mxu0 0.0
    %110 = vmatpush.msra.mxu0 0.0
    %111 = vmatpush.msra.mxu0 %v81
    %112 = vmatpush.msra.mxu0 %v80
    %113 = vmatmul.f32.gmra.mxu0 %v95
    %v114 = vpop.f32.mrf.mxu0
    %v115 = vadd.f32 %v92, %v114
    %116 = vdwg.mxu0
    %v117 = vld [vmem:[%s4] sm:$0x1]
    %v119 = vperm.slane %v117, 0
    %v121 = vadd.f32 %v115, %v119
    %v122 = vmax.f32 %v121, 0.0
    %v123 = vld [vmem:[#allocation4] sm:$0xff]
    %v124 = vld [vmem:[#allocation4 + $0x8] sm:$0xff]
    %v125 = vld [vmem:[#allocation4 + $0x10] sm:$0xff]
    %v126 = vld [vmem:[#allocation4 + $0x18] sm:$0xff]
    %v127 = vld [vmem:[#allocation4 + $0x20] sm:$0xff]
    %v128 = vld [vmem:[#allocation4 + $0x28] sm:$0xff]
    %v129 = vld [vmem:[#allocation4 + $0x30] sm:$0xff]
    %v130 = vld [vmem:[#allocation4 + $0x38] sm:$0xff]
    %v131 = vld [vmem:[#allocation4 + $0x40] sm:$0xff]
    %v132 = vld [vmem:[#allocation4 + $0x48] sm:$0xff]
    %v133 = vld [vmem:[#allocation4 + $0x50] sm:$0xff]
    %v134 = vld [vmem:[#allocation4 + $0x58] sm:$0xff]
    %v135 = vld [vmem:[#allocation4 + $0x60] sm:$0xff]
    %v136 = vld [vmem:[#allocation4 + $0x68] sm:$0xff]
    %v137 = vld [vmem:[#allocation4 + $0x70] sm:$0xff]
    %v138 = vld [vmem:[#allocation4 + $0x78] sm:$0xff]
    %v139 = vld [vmem:[%s6] sm:$0x1]
    %v141 = vperm.slane %v139, 0
    %143 = vmatpush.msra.mxu0 %v138
    %144 = vmatpush.msra.mxu0 %v137
    %145 = vmatpush.msra.mxu0 %v136
    %146 = vmatpush.msra.mxu0 %v135
    %147 = vmatpush.msra.mxu0 %v134
    %148 = vmatpush.msra.mxu0 %v133
    %149 = vmatpush.msra.mxu0 %v132
    %150 = vmatpush.msra.mxu0 %v131
    %151 = vmatpush.msra.mxu0 %v130
    %152 = vmatpush.msra.mxu0 %v129
    %153 = vmatpush.msra.mxu0 %v128
    %154 = vmatpush.msra.mxu0 %v127
    %155 = vmatpush.msra.mxu0 %v126
    %156 = vmatpush.msra.mxu0 %v125
    %157 = vmatpush.msra.mxu0 %v124
    %158 = vmatpush.msra.mxu0 %v123
    %159 = vmatmul.f32.gmra.mxu0 %v122
    %v160 = vpop.f32.mrf.mxu0
    %v161 = vadd.f32 %v141, %v160
    %162 = vdwg.mxu0
    %v163 = vmax.f32 %v161, 0.0
    %v164 = vld [vmem:[#allocation6] sm:$0xff]
    %v165 = vld [vmem:[#allocation6 + $0x8] sm:$0xff]
    %v166 = vld [vmem:[#allocation6 + $0x10] sm:$0xff]
    %v167 = vld [vmem:[#allocation6 + $0x18] sm:$0xff]
    %v168 = vld [vmem:[#allocation6 + $0x20] sm:$0xff]
    %v169 = vld [vmem:[#allocation6 + $0x28] sm:$0xff]
    %v170 = vld [vmem:[#allocation6 + $0x30] sm:$0xff]
    %v171 = vld [vmem:[#allocation6 + $0x38] sm:$0xff]
    %v172 = vld [vmem:[#allocation6 + $0x40] sm:$0xff]
    %v173 = vld [vmem:[#allocation6 + $0x48] sm:$0xff]
    %v174 = vld [vmem:[#allocation6 + $0x50] sm:$0xff]
    %v175 = vld [vmem:[#allocation6 + $0x58] sm:$0xff]
    %v176 = vld [vmem:[#allocation6 + $0x60] sm:$0xff]
    %v177 = vld [vmem:[#allocation6 + $0x68] sm:$0xff]
    %v178 = vld [vmem:[#allocation6 + $0x70] sm:$0xff]
    %v179 = vld [vmem:[#allocation6 + $0x78] sm:$0xff]
    %v180 = vld [vmem:[%s8] sm:$0x1]
    %v182 = vperm.slane %v180, 0
    %184 = vmatpush.msra.mxu0 %v179
    %185 = vmatpush.msra.mxu0 %v178
    %186 = vmatpush.msra.mxu0 %v177
    %187 = vmatpush.msra.mxu0 %v176
    %188 = vmatpush.msra.mxu0 %v175
    %189 = vmatpush.msra.mxu0 %v174
    %190 = vmatpush.msra.mxu0 %v173
    %191 = vmatpush.msra.mxu0 %v172
    %192 = vmatpush.msra.mxu0 %v171
    %193 = vmatpush.msra.mxu0 %v170
    %194 = vmatpush.msra.mxu0 %v169
    %195 = vmatpush.msra.mxu0 %v168
    %196 = vmatpush.msra.mxu0 %v167
    %197 = vmatpush.msra.mxu0 %v166
    %198 = vmatpush.msra.mxu0 %v165
    %199 = vmatpush.msra.mxu0 %v164
    %200 = vmatmul.f32.gmra.mxu0 %v163
    %v201 = vpop.f32.mrf.mxu0
    %v202 = vadd.f32 %v182, %v201
    %203 = vdwg.mxu0
    %v204 = vtanh.pop %v202
    %vm205 = vcmp.gt.f32.partialorder %v202, 20.0
    %v206 = vmin.f32 %v202, 20.0
    %v207 = vmul.f32 %v206, 1.442695
    %v208 = vpow.pop %v207
    %v209 = vadd.f32 %v208, 1.0
    %v210 = vlog2.pop %v209
    %v211 = vmul.f32 %v210, 0.6931472
    %v212 = vmul.f32 -0.5, %v208
    %v213 = vadd.f32 %v212, 1.0
    %v214 = vmul.f32 %v213, %v208
    %v215 = vand.u32 2147483647, %v208
    %vm216 = vcmp.lt.f32.partialorder %v215, 0.0004427343
    %v217 = vsel %vm216, %v214, %v211
    %v218 = vsel %vm205, %v202, %v217
    %v219 = vlaneseq
    %v220 = vand.u32 %v219, 127
    %vm221 = vcmp.lt.s32.totalorder %v220, 4
    %v222 = vsel %vm221, %v204, %v218
    %223 = vst [vmem:[%s9] sm:$0xff] %v222
    // Predicated region
    $region50: #{credit_forward.1} parent=1 // pred_check
      _
    $region51: #{credit_forward.1} parent=1 // pred_check_branch
      %225 = sbr.rel (0) target = $region53
    $region52: #{credit_forward.1} parent=1 // pred_region
      _
    $region53: #{credit_forward.1} parent=1 // pred_fallthru
      _
    // Predicated region
    $region54: #{credit_forward.1} parent=1 // pred_check
      _
    $region55: #{credit_forward.1} parent=1 // pred_check_branch
      %227 = sbr.rel (0) target = $region57
    $region56: #{credit_forward.1} parent=1 // pred_region
      _
    $region57: #{credit_forward.1} parent=1 // pred_fallthru
      _
    %228 = vsyncpa [#allocation3], 1
    %229 = vsyncpa [#allocation5], 1

</llo_original>
